<compile_context>
chip_gen: v7x
topology: tpu7x:2x2x1
jax: 0.10.0
libtpu: 0.0.40
codegen_flags: <defaults>
</compile_context>

<pallas_src>
import functools

import jax
import jax.numpy as jnp
from jax import lax
from jax.experimental import pallas as pl
from jax.experimental.pallas import tpu as pltpu


def _attention_kernel(x_ref, w0_ref, out_ref, *, att_num, att_times, att_weight):
    """One graph per grid step.

    x_ref   : (1, N, D)        VMEM
    w0_ref  : (D, D)           VMEM (shared across the grid)
    out_ref : (1, att_num, D)  VMEM
    """
    x = x_ref[0]
    if x.dtype != jnp.float32:
        x = x.astype(jnp.float32)
    _, d = x.shape

    if att_weight:
        w0 = w0_ref[...]
        if w0.dtype != jnp.float32:
            w0 = w0.astype(jnp.float32)

    def one_step(x_cur):
        # mean over the node (sublane) axis -> (1, D)
        temp = jnp.mean(x_cur, axis=0, keepdims=True)
        if att_weight:
            h_avg = jnp.tanh(
                jnp.dot(temp, w0, preferred_element_type=jnp.float32)
            )
        else:
            h_avg = temp
        # 'dot' attention (W = identity): sigmoid(x @ h_avg^T) computed as a
        # VPU elementwise multiply + lane-axis reduce instead of an M=1 matmul.
        att = jax.nn.sigmoid(jnp.sum(x_cur * h_avg, axis=-1, keepdims=True))  # (N, 1)
        x_new = x_cur * att
        # att^T @ x_cur == column-sum of x_cur * att  (fused with the update).
        output = jnp.sum(x_new, axis=0, keepdims=True)                        # (1, D)
        return x_new, output

    if att_times <= 4:
        # Small fixed trip count: static unroll.
        output = None
        for _ in range(att_times):
            x, output = one_step(x)
    else:
        # Large trip count: keep register pressure bounded with a visible loop.
        def body(_, carry):
            x_cur, _ = carry
            return one_step(x_cur)

        x, output = lax.fori_loop(
            0, att_times, body, (x, jnp.zeros((1, d), jnp.float32))
        )

    # All att_num heads share W_0 and restart from the same x -> identical rows.
    out_ref[0] = jnp.broadcast_to(output, (att_num, d)).astype(out_ref.dtype)


def attention_forward_batched(x, w0, *, att_num, att_times, att_weight):
    """Batched forward: x is (B, N, D) (B graphs with the same node count).

    Returns (B, att_num * D); row b equals Attention._call_one_mat(x[b]).
    """
    b, n, d = x.shape
    assert w0.shape == (d, d)
    assert att_times >= 1 and att_num >= 1

    kernel = functools.partial(
        _attention_kernel,
        att_num=att_num,
        att_times=att_times,
        att_weight=att_weight,
    )

    out = pl.pallas_call(
        kernel,
        out_shape=jax.ShapeDtypeStruct((b, att_num, d), jnp.float32),
        grid=(b,),
        in_specs=[
            pl.BlockSpec((1, n, d), lambda i: (i, 0, 0)),   # graph i
            pl.BlockSpec((d, d), lambda i: (0, 0)),         # shared W_0
        ],
        out_specs=pl.BlockSpec((1, att_num, d), lambda i: (i, 0, 0)),
        compiler_params=pltpu.CompilerParams(
            dimension_semantics=("parallel",),
            vmem_limit_bytes=32 * 1024 * 1024,
        ),
    )(x, w0)

    # torch.cat(outputs, dim=1) of att_num (1, D) rows == reshape of (att_num, D).
    return out.reshape(b, att_num * d)


def attention_forward(x, w0, *, att_num, att_times, att_weight):
    """Single-matrix forward: x is (N, D), returns (1, att_num * D)."""
    return attention_forward_batched(
        x[None], w0, att_num=att_num, att_times=att_times, att_weight=att_weight
    )


def _attention_ref(x, w0, *, att_num, att_times, att_weight):
    """Pure-JAX reference mirroring the PyTorch module line by line."""
    outs = []
    for _ in range(att_num):
        xc = x
        out = None
        for _ in range(att_times):
            temp = jnp.mean(xc, axis=0, keepdims=True)
            h_avg = jnp.tanh(temp @ w0) if att_weight else temp
            att = jax.nn.sigmoid(xc @ h_avg.T)
            out = att.T @ xc
            xc = xc * att
        outs.append(out)
    return jnp.concatenate(outs, axis=1)


def glorot_init(key, shape):
    """xavier_normal_: std = sqrt(2 / (fan_in + fan_out))."""
    fan_in, fan_out = shape[0], shape[1]
    std = jnp.sqrt(2.0 / (fan_in + fan_out))
    return std * jax.random.normal(key, shape, dtype=jnp.float32)


if __name__ == "__main__":
    # Small, deterministic example consistent with the module.
    B = 2          # batch of graphs (amortizes launch/DMA latency)
    N = 8          # number of nodes per graph
    D = 32         # input_dim / emb_dim
    ATT_NUM = 2
    ATT_TIMES = 2
    ATT_WEIGHT = True   # att_style = 'dot'

    key = jax.random.PRNGKey(0)
    kx, kw = jax.random.split(key)
    x = jax.random.normal(kx, (B, N, D), dtype=jnp.float32)
    w0 = glorot_init(kw, (D, D))

    out = attention_forward_batched(
        x, w0, att_num=ATT_NUM, att_times=ATT_TIMES, att_weight=ATT_WEIGHT
    )
    out = jax.block_until_ready(out)
    assert out.shape == (B, ATT_NUM * D)

    # Correctness check against the straight-line reference.
    ref = jnp.concatenate(
        [
            _attention_ref(
                x[i], w0, att_num=ATT_NUM, att_times=ATT_TIMES, att_weight=ATT_WEIGHT
            )
            for i in range(B)
        ],
        axis=0,
    )
    assert jnp.allclose(out, ref, atol=1e-5, rtol=1e-5)

    print("KERNEL_OK")
</pallas_src>

<mosaic_0001>
module attributes {stable_mosaic.version = 11 : i64} {
  func.func @_attention_kernel(%arg0: i32, %arg1: memref<1x8x32xf32, #tpu.memory_space<vmem>>, %arg2: memref<32x32xf32, #tpu.memory_space<vmem>>, %arg3: memref<1x2x32xf32, #tpu.memory_space<vmem>>) attributes {dimension_semantics = [#tpu.dimension_semantics<parallel>], iteration_bounds = array<i64: 2>, scalar_prefetch = 0 : i64, scratch_operands = 0 : i64, tpu.core_type = #tpu.core_type<tc>, window_params = [{transform_indices = @transform_0, window_bounds = array<i64: 1, 8, 32>}, {pipeline_mode = #tpu.pipeline_mode<synchronous>, transform_indices = @transform_1, window_bounds = array<i64: 32, 32>}, {transform_indices = @transform_2, window_bounds = array<i64: 1, 2, 32>}]} {
    %c0 = arith.constant 0 : index
    %c0_0 = arith.constant 0 : index
    %c0_1 = arith.constant 0 : index
    %0 = vector.load %arg1[%c0, %c0_0, %c0_1] : memref<1x8x32xf32, #tpu.memory_space<vmem>>, vector<1x8x32xf32>
    %1 = vector.shape_cast %0 : vector<1x8x32xf32> to vector<8x32xf32>
    %c0_2 = arith.constant 0 : index
    %c0_3 = arith.constant 0 : index
    %2 = vector.load %arg2[%c0_2, %c0_3] : memref<32x32xf32, #tpu.memory_space<vmem>>, vector<32x32xf32>
    %cst = arith.constant dense<0.000000e+00> : vector<32xf32>
    %3 = vector.multi_reduction <add>, %1, %cst [0] : vector<8x32xf32> to vector<32xf32>
    %4 = vector.shape_cast %3 : vector<32xf32> to vector<1x32xf32>
    %cst_4 = arith.constant 8.000000e+00 : f32
    %5 = vector.broadcast %cst_4 : f32 to vector<1x32xf32>
    %6 = arith.divf %4, %5 : vector<1x32xf32>
    %cst_5 = arith.constant dense<0.000000e+00> : vector<1x32xf32>
    %7 = tpu.matmul %6, %2, %cst_5 {dimension_numbers = #tpu.dot_dimension_numbers<[1], [0], [0], [1], [0, 0, 1, 1], [], []>} : vector<1x32xf32>, vector<32x32xf32>, vector<1x32xf32> -> vector<1x32xf32>
    %8 = math.tanh %7 : vector<1x32xf32>
    %9 = vector.broadcast %8 : vector<1x32xf32> to vector<8x32xf32>
    %10 = arith.mulf %1, %9 : vector<8x32xf32>
    %cst_6 = arith.constant dense<0.000000e+00> : vector<8xf32>
    %11 = vector.multi_reduction <add>, %10, %cst_6 [1] : vector<8x32xf32> to vector<8xf32>
    %12 = vector.shape_cast %11 : vector<8xf32> to vector<8x1xf32>
    %13 = arith.negf %12 : vector<8x1xf32>
    %14 = math.exp %13 : vector<8x1xf32>
    %cst_7 = arith.constant 1.000000e+00 : f32
    %15 = vector.broadcast %cst_7 : f32 to vector<8x1xf32>
    %16 = arith.addf %15, %14 : vector<8x1xf32>
    %17 = arith.divf %15, %16 : vector<8x1xf32>
    %18 = vector.broadcast %17 : vector<8x1xf32> to vector<8x32xf32>
    %19 = arith.mulf %1, %18 : vector<8x32xf32>
    %cst_8 = arith.constant dense<0.000000e+00> : vector<32xf32>
    %20 = vector.multi_reduction <add>, %19, %cst_8 [0] : vector<8x32xf32> to vector<32xf32>
    %21 = vector.shape_cast %20 : vector<32xf32> to vector<1x32xf32>
    %cst_9 = arith.constant 8.000000e+00 : f32
    %22 = vector.broadcast %cst_9 : f32 to vector<1x32xf32>
    %23 = arith.divf %21, %22 : vector<1x32xf32>
    %cst_10 = arith.constant dense<0.000000e+00> : vector<1x32xf32>
    %24 = tpu.matmul %23, %2, %cst_10 {dimension_numbers = #tpu.dot_dimension_numbers<[1], [0], [0], [1], [0, 0, 1, 1], [], []>} : vector<1x32xf32>, vector<32x32xf32>, vector<1x32xf32> -> vector<1x32xf32>
    %25 = math.tanh %24 : vector<1x32xf32>
    %26 = vector.broadcast %25 : vector<1x32xf32> to vector<8x32xf32>
    %27 = arith.mulf %19, %26 : vector<8x32xf32>
    %cst_11 = arith.constant dense<0.000000e+00> : vector<8xf32>
    %28 = vector.multi_reduction <add>, %27, %cst_11 [1] : vector<8x32xf32> to vector<8xf32>
    %29 = vector.shape_cast %28 : vector<8xf32> to vector<8x1xf32>
    %30 = arith.negf %29 : vector<8x1xf32>
    %31 = math.exp %30 : vector<8x1xf32>
    %cst_12 = arith.constant 1.000000e+00 : f32
    %32 = vector.broadcast %cst_12 : f32 to vector<8x1xf32>
    %33 = arith.addf %32, %31 : vector<8x1xf32>
    %34 = arith.divf %32, %33 : vector<8x1xf32>
    %35 = vector.broadcast %34 : vector<8x1xf32> to vector<8x32xf32>
    %36 = arith.mulf %19, %35 : vector<8x32xf32>
    %cst_13 = arith.constant dense<0.000000e+00> : vector<32xf32>
    %37 = vector.multi_reduction <add>, %36, %cst_13 [0] : vector<8x32xf32> to vector<32xf32>
    %38 = vector.shape_cast %37 : vector<32xf32> to vector<1x32xf32>
    %39 = vector.shape_cast %38 : vector<1x32xf32> to vector<1x32xf32>
    %40 = vector.broadcast %39 : vector<1x32xf32> to vector<2x32xf32>
    %c0_14 = arith.constant 0 : index
    %c0_15 = arith.constant 0 : index
    %c0_16 = arith.constant 0 : index
    %41 = vector.load %arg3[%c0_14, %c0_15, %c0_16] : memref<1x2x32xf32, #tpu.memory_space<vmem>>, vector<1x2x32xf32>
    %42 = vector.shape_cast %41 : vector<1x2x32xf32> to vector<2x32xf32>
    %43 = vector.shape_cast %40 : vector<2x32xf32> to vector<1x2x32xf32>
    tpu.vector_store %arg3[%c0_14, %c0_15, %c0_16], %43 {strides = array<i32>} : memref<1x2x32xf32, #tpu.memory_space<vmem>>, vector<1x2x32xf32>,
    return
  }
  func.func @transform_0(%arg0: i32) -> (i32, i32, i32) {
    %c0_i32 = arith.constant 0 : i32
    %c0_i32_0 = arith.constant 0 : i32
    %c0_i32_1 = arith.constant 0 : i32
    return %arg0, %c0_i32, %c0_i32_0 : i32, i32, i32
  }
  func.func @transform_1(%arg0: i32) -> (i32, i32) {
    %c0_i32 = arith.constant 0 : i32
    %c0_i32_0 = arith.constant 0 : i32
    %c0_i32_1 = arith.constant 0 : i32
    return %c0_i32, %c0_i32_0 : i32, i32
  }
  func.func @transform_2(%arg0: i32) -> (i32, i32, i32) {
    %c0_i32 = arith.constant 0 : i32
    %c0_i32_0 = arith.constant 0 : i32
    %c0_i32_1 = arith.constant 0 : i32
    return %arg0, %c0_i32, %c0_i32_0 : i32, i32, i32
  }
}

</mosaic_0001>

<llo_original>
// kernel: tpu_custom_call.1
$region0: #{tpu_custom_call.1}
  #allocation0 [shape = 'u32[]', space=smem, size = 0x4, offset = 0x4, fixed_abs, tag = 'smem constant byte address 0x4 - core index']
  #allocation1 [shape = 'u32[144,128]{1,0:T(1,128)}', space=vmem, size = 0x12000, scoped, tag = 'internal scratch']
  %s0 = inlined_call_operand.hbm [shape: f32[2,8,32], index: 0, kind: input, shape index: {}]
  %s1 = inlined_call_operand.hbm [shape: f32[32,32], index: 1, kind: input, shape index: {}]
  %s2 = inlined_call_operand.hbm [shape: f32[2,2,32], index: 2, kind: output, shape index: {}]
  %s3 = sld [smem:[#allocation0]]
  $region49: #{tpu_custom_call.1} parent=0
    _
  %s5 = ssub.s32 1, %s3
  %s6 = scalar_select 0, %s5, %s3
  $region1: #{tpu_custom_call.1} parent=0
    #allocation2 [shape = 'u8[8192]{0}', space=vmem, size = 0x2000, scoped, tag = 'input window, operand 0']
    #allocation3 [shape = 's32[2]{0}', space=sflag, size = 0x8, scoped, tag = 'scoped memory for tpu_custom_call.1']
    #allocation4 [shape = 's32[2]{0}', space=sflag, size = 0x8, scoped, tag = 'scoped memory for tpu_custom_call.1']
    #allocation5 [shape = 'u8[16384]{0}', space=vmem, size = 0x4000, scoped, tag = 'input window, operand 1, single buffered']
    #allocation6 [shape = 's32[1]{0}', space=sflag, size = 0x4, scoped, tag = 'scoped memory for tpu_custom_call.1']
    #allocation7 [shape = 'u8[2048]{0}', space=vmem, size = 0x800, scoped, tag = 'output window, operand 0']
    %7 = vsyncpa [#allocation3], 0
    %s8 = scalar_lea.sflag [#allocation3], 1
    %9 = vsyncpa %s8, 0
    %10 = vsyncpa [#allocation6], 0
    %11 = vsyncpa [#allocation4], 0
    %s12 = scalar_lea.sflag [#allocation4], 1
    %13 = vsyncpa %s12, 0
    loop: start=0, step=1, limit=4
    $region2: #{tpu_custom_call.1} parent=1 // loop_pre_header
      _
    $region3: #{tpu_custom_call.1} parent=1 // loop_header
      %s15 = sphi 0, %s19
      %p16 = scmp.ge.s32.totalorder %s15, 4
      %s25 = sphi 0, %s27
      %s28 = sphi 0, %s25
      %s29 = sphi 0, %s28
      %s45 = sphi 0, %s29
      %s49 = sphi 0, %s49
      %s51 = sphi 0, %s49
      %s52 = sphi 0, %s51
      %s66 = sphi 0, %s52
      %s72 = sphi 0, %s74
      %s75 = sphi 0, %s72
      %s76 = sphi 0, %s75
      %s92 = sphi 0, %s76
    $region4: #{tpu_custom_call.1} parent=1 // loop_header_branch
      %18 = sbr.rel (%p16) target = $region8
    $region5: #{tpu_custom_call.1} parent=1 // loop_body
      %s20 = ssub.s32 %s15, 1
      %s21 = ssub.s32 %s15, 2
      %s22 = sadd.s32 %s15, 1
      %s23 = ssub.s32 %s15, %s22
      %p24 = scmp.eq.s32.totalorder %s23, 0
      %s26 = sadd.s32 %s25, 1
      %s27 = scalar_select %p24, %s25, %s26
      %p30 = pneg %p24
      %p31 = scmp.eq.s32.totalorder %s15, 1
      %p32 = por %p30, %p31
      %p33 = scmp.ne.s32.totalorder %s25, %s28
      %p34 = scmp.eq.s32.totalorder %s15, 0
      %p35 = por %p33, %p34
      %p36 = scmp.ne.s32.totalorder %s25, %s28
      %p37 = scmp.eq.s32.totalorder %s20, 1
      %p38 = por %p36, %p37
      %p39 = scmp.ne.s32.totalorder %s28, %s29
      %p40 = scmp.eq.s32.totalorder %s20, 0
      %p41 = por %p39, %p40
      %p42 = scmp.ne.s32.totalorder %s28, %s29
      %p43 = scmp.eq.s32.totalorder %s21, 1
      %p44 = por %p42, %p43
      %p46 = scmp.ne.s32.totalorder %s29, %s45
      %p47 = scmp.eq.s32.totalorder %s21, 0
      %p48 = por %p46, %p47
      %s50 = sadd.s32 %s49, 1
      %p53 = scmp.eq.s32.totalorder %s15, 1
      %p54 = scmp.ne.s32.totalorder %s49, %s51
      %p55 = scmp.eq.s32.totalorder %s15, 0
      %p56 = por %p54, %p55
      %p57 = scmp.ne.s32.totalorder %s49, %s51
      %p58 = scmp.eq.s32.totalorder %s20, 1
      %p59 = por %p57, %p58
      %p60 = scmp.ne.s32.totalorder %s51, %s52
      %p61 = scmp.eq.s32.totalorder %s20, 0
      %p62 = por %p60, %p61
      %p63 = scmp.ne.s32.totalorder %s51, %s52
      %p64 = scmp.eq.s32.totalorder %s21, 1
      %p65 = por %p63, %p64
      %p67 = scmp.ne.s32.totalorder %s52, %s66
      %p68 = scmp.eq.s32.totalorder %s21, 0
      %p69 = por %p67, %p68
      %s70 = ssub.s32 %s15, %s22
      %p71 = scmp.eq.s32.totalorder %s70, 0
      %s73 = sadd.s32 %s72, 1
      %s74 = scalar_select %p71, %s72, %s73
      %p77 = pneg %p71
      %p78 = scmp.eq.s32.totalorder %s15, 1
      %p79 = por %p77, %p78
      %p80 = scmp.ne.s32.totalorder %s72, %s75
      %p81 = scmp.eq.s32.totalorder %s15, 0
      %p82 = por %p80, %p81
      %p83 = scmp.ne.s32.totalorder %s72, %s75
      %p84 = scmp.eq.s32.totalorder %s20, 1
      %p85 = por %p83, %p84
      %p86 = scmp.ne.s32.totalorder %s75, %s76
      %p87 = scmp.eq.s32.totalorder %s20, 0
      %p88 = por %p86, %p87
      %p89 = scmp.ne.s32.totalorder %s75, %s76
      %p90 = scmp.eq.s32.totalorder %s21, 1
      %p91 = por %p89, %p90
      %p93 = scmp.ne.s32.totalorder %s76, %s92
      %p94 = scmp.eq.s32.totalorder %s21, 0
      %p95 = por %p93, %p94
      %p96 = scmp.le.s32.totalorder 1, %s15
      %p97 = scmp.lt.s32.totalorder %s15, 3
      %p98 = pnand %p96, %p97
      %p99 = pneg %p98
      // Predicated region
      $region9: #{tpu_custom_call.1} parent=5 // pred_check
        _
      $region10: #{tpu_custom_call.1} parent=5 // pred_check_branch
        %101 = sbr.rel (%p98) target = $region12
      $region11: #{tpu_custom_call.1} parent=5 // pred_region
        %s102 = ssub.s32 %s15, 1
        // Predicated region
        $region13: #{tpu_custom_call.1} parent=11 // pred_check
          %p103 = pneg %p62
        $region14: #{tpu_custom_call.1} parent=11 // pred_check_branch
          %105 = sbr.rel (%p103) target = $region16
        $region15: #{tpu_custom_call.1} parent=11 // pred_region
          %s107 = ssub.s32 512, 512
          %108 = vsyncadd [#allocation6], %s107
          %s109 = sshll.u32 [#allocation5], 4
          %s110 = int_to_ptr.vmem [resolvable:$true] %s109
          %115 = dma.hbm_to_vmem [thread:$0]  %s1, 512, %s110, [#allocation6], 128, 128, 8
        $region16: #{tpu_custom_call.1} parent=11 // pred_fallthru
          _
      $region12: #{tpu_custom_call.1} parent=5 // pred_fallthru
        _
      %p116 = scmp.lt.s32.totalorder %s15, 2
      // Predicated region
      $region17: #{tpu_custom_call.1} parent=5 // pred_check
        %p117 = pneg %p116
      $region18: #{tpu_custom_call.1} parent=5 // pred_check_branch
        %119 = sbr.rel (%p117) target = $region20
      $region19: #{tpu_custom_call.1} parent=5 // pred_region
        // Predicated region
        $region21: #{tpu_custom_call.1} parent=19 // pred_check
          %p120 = pneg %p35
        $region22: #{tpu_custom_call.1} parent=19 // pred_check_branch
          %122 = sbr.rel (%p120) target = $region24
        $region23: #{tpu_custom_call.1} parent=19 // pred_region
          %s123 = sand.u32 %s25, 1
          %s124 = scalar_lea.sflag [#allocation3], %s123
          %s125 = sand.u32 %s25, 1
          %s126 = smul.addr %s125, 8
          %s127 = scalar_lea.vmem [#allocation2], %s126
          %s129 = ssub.s32 128, 128
          %130 = vsyncadd %s124, %s129
          %s131 = smul.addr %s15, 128
          %s132 = scalar_lea.hbm %s0, %s131
          %s134 = sshll.u32 %s127, 4
          %s135 = int_to_ptr.vmem [resolvable:$true] %s134
          %137 = dma.hbm_to_vmem [thread:$0]  %s132, 128, %s135, %s124
        $region24: #{tpu_custom_call.1} parent=19 // pred_fallthru
          _
      $region20: #{tpu_custom_call.1} parent=5 // pred_fallthru
        _
      %p138 = scmp.le.s32.totalorder 1, %s15
      %p139 = scmp.lt.s32.totalorder %s15, 3
      %p140 = pnand %p138, %p139
      %p141 = pneg %p140
      // Predicated region
      $region25: #{tpu_custom_call.1} parent=5 // pred_check
        _
      $region26: #{tpu_custom_call.1} parent=5 // pred_check_branch
        %143 = sbr.rel (%p140) target = $region28
      $region27: #{tpu_custom_call.1} parent=5 // pred_region
        %s144 = ssub.s32 %s15, 1
        %s145 = sand.u32 %s28, 1
        %s146 = scalar_lea.sflag [#allocation3], %s145
        %s147 = sand.u32 %s28, 1
        %s148 = smul.addr %s147, 8
        %s149 = scalar_lea.vmem [#allocation2], %s148
        // Predicated region
        $region29: #{tpu_custom_call.1} parent=27 // pred_check
          %p150 = pneg %p41
        $region30: #{tpu_custom_call.1} parent=27 // pred_check_branch
          %152 = sbr.rel (%p150) target = $region32
        $region31: #{tpu_custom_call.1} parent=27 // pred_region
          %153 = dma.done %s146, 128
        $region32: #{tpu_custom_call.1} parent=27 // pred_fallthru
          _
        // Predicated region
        $region33: #{tpu_custom_call.1} parent=27 // pred_check
          %p154 = pneg %p62
        $region34: #{tpu_custom_call.1} parent=27 // pred_check_branch
          %156 = sbr.rel (%p154) target = $region36
        $region35: #{tpu_custom_call.1} parent=27 // pred_region
          %157 = dma.done [#allocation6], 512
        $region36: #{tpu_custom_call.1} parent=27 // pred_fallthru
          _
        %s158 = sand.u32 %s28, 1
        %s159 = scalar_lea.sflag [#allocation3], %s158
        %s160 = sand.u32 %s28, 1
        %s161 = smul.addr %s160, 8
        %s162 = scalar_lea.vmem [#allocation2], %s161
        %p163 = pneg %p41
        %p164 = pneg %p38
        %p165 = pneg %p62
        %p166 = pneg %p59
        %p167 = pneg %p88
        %p168 = pneg %p85
        %s169 = sand.u32 %s75, 1
        %s170 = scalar_lea.sflag [#allocation4], %s169
        %s171 = sand.u32 %s75, 1
        %s172 = smul.addr %s171, 2
        %s173 = scalar_lea.vmem [#allocation7], %s172
        %v174 = vld [vmem:[%s149] sm:$0xff]
        %v175 = vld [vmem:[#allocation5] sm:$0xff]
        %v176 = vld [vmem:[#allocation5 + $0x8] sm:$0xff]
        %v177 = vld [vmem:[#allocation5 + $0x10] sm:$0xff]
        %v178 = vld [vmem:[#allocation5 + $0x18] sm:$0xff]
        %vm179 = vcmask 261120
        %v180 = vsel %vm179, %v174, 0.0
        %v181 = vrot.slane %v180, 4
        %v182 = vadd.f32 %v180, %v181
        %v183 = vrot.slane %v182, 2
        %v184 = vadd.f32 %v182, %v183
        %v185 = vrot.slane %v184, 1
        %v186 = vadd.f32 %v184, %v185
        %v187 = vrcp.pop 8.0
        %v188 = vmul.f32 %v186, %v187
        %v190 = vsel %vm179, %v188, 0
        %192 = vmatprep.subr.mxu0 0.0
        %193 = vmatpush1.msra.mxu0 %v175
        %194 = vmatprep.subr.mxu0 0.0
        %195 = vmatpush1.msra.mxu0 %v176
        %196 = vmatprep.subr.mxu0 0.0
        %197 = vmatpush1.msra.mxu0 %v177
        %198 = vmatprep.subr.mxu0 0.0
        %199 = vmatpush1.msra.mxu0 %v178
        %200 = vmatprep.subr.mxu0 0.0
        %201 = vmatpush1.msra.mxu0 0.0
        %202 = vmatprep.subr.mxu0 0.0
        %203 = vmatpush1.msra.mxu0 0.0
        %204 = vmatprep.subr.mxu0 0.0
        %205 = vmatpush1.msra.mxu0 0.0
        %206 = vmatprep.subr.mxu0 0.0
        %207 = vmatpush1.msra.mxu0 0.0
        %208 = vmatprep.subr.mxu0 0.0
        %209 = vmatpush1.msra.mxu0 0.0
        %210 = vmatprep.subr.mxu0 0.0
        %211 = vmatpush1.msra.mxu0 0.0
        %212 = vmatprep.subr.mxu0 0.0
        %213 = vmatpush1.msra.mxu0 0.0
        %214 = vmatprep.subr.mxu0 0.0
        %215 = vmatpush1.msra.mxu0 0.0
        %216 = vmatprep.subr.mxu0 0.0
        %217 = vmatpush1.msra.mxu0 0.0
        %218 = vmatprep.subr.mxu0 0.0
        %219 = vmatpush1.msra.mxu0 0.0
        %220 = vmatprep.subr.mxu0 0.0
        %221 = vmatpush1.msra.mxu0 0.0
        %222 = vmatprep.subr.mxu0 0.0
        %223 = vmatpush1.msra.mxu0 0.0
        %224 = vmatprep.subr.mxu0 0.0
        %225 = vmatpush1.msra.mxu0 0.0
        %226 = vmatprep.subr.mxu0 0.0
        %227 = vmatpush1.msra.mxu0 0.0
        %228 = vmatprep.subr.mxu0 0.0
        %229 = vmatpush1.msra.mxu0 0.0
        %230 = vmatprep.subr.mxu0 0.0
        %231 = vmatpush1.msra.mxu0 0.0
        %232 = vmatprep.subr.mxu0 0.0
        %233 = vmatpush1.msra.mxu0 0.0
        %234 = vmatprep.subr.mxu0 0.0
        %235 = vmatpush1.msra.mxu0 0.0
        %236 = vmatprep.subr.mxu0 0.0
        %237 = vmatpush1.msra.mxu0 0.0
        %238 = vmatprep.subr.mxu0 0.0
        %239 = vmatpush1.msra.mxu0 0.0
        %240 = vmatprep.subr.mxu0 0.0
        %241 = vmatpush1.msra.mxu0 0.0
        %242 = vmatprep.subr.mxu0 0.0
        %243 = vmatpush1.msra.mxu0 0.0
        %244 = vmatprep.subr.mxu0 0.0
        %245 = vmatpush1.msra.mxu0 0.0
        %246 = vmatprep.subr.mxu0 0.0
        %247 = vmatpush1.msra.mxu0 0.0
        %248 = vmatprep.subr.mxu0 0.0
        %249 = vmatpush1.msra.mxu0 0.0
        %250 = vmatprep.subr.mxu0 0.0
        %251 = vmatpush1.msra.mxu0 0.0
        %252 = vmatprep.subr.mxu0 0.0
        %253 = vmatpush1.msra.mxu0 0.0
        %254 = vmatprep.subr.mxu0 0.0
        %255 = vmatpush1.msra.mxu0 0.0
        %256 = vmatprep.mubr.f32.mxu0 0.0
        %257 = vmatmul.mubr.f32.gmra.mrb[0].mxu0 %v190
        %v258 = vpop.f32.mrb[0].mxu0
        %v259 = vadd.f32 0.0, %v258
        %v260 = vpop.f32.mrb[0].mxu0
        %261 = vdwg.mxu0
        %v262 = vtanh.pop %v259
        %v263 = vlaneseq
        %v264 = vshrl.u32 %v263, 7
        %v265 = vsub.s32 0, %v264
        %v266 = vrot.slane %v262, %v265
        %v267 = vmul.f32 %v174, %v266
        %v268 = vsel %vm179, %v267, 0.0
        %269 = vadd.xlane.f32.xlu0 %v268
        %v270 = vpop.xlane.xlu0 %269
        %v271 = vxor.u32 %v270, 2147483648
        %v272 = vmul.f32 %v271, 1.442695
        %v273 = vpow.pop %v272
        %v274 = vadd.f32 %v273, 1.0
        %v275 = vrcp.pop %v274
        %v276 = vmul.f32 1.0, %v275
        %v277 = vmul.f32 %v174, %v276
        %v278 = vsel %vm179, %v277, 0.0
        %v279 = vrot.slane %v278, 4
        %v280 = vadd.f32 %v278, %v279
        %v281 = vrot.slane %v280, 2
        %v282 = vadd.f32 %v280, %v281
        %v283 = vrot.slane %v282, 1
        %v284 = vadd.f32 %v282, %v283
        %v285 = vmul.f32 %v284, %v187
        %v287 = vsel %vm179, %v285, 0
        %289 = vmatprep.subr.mxu0 0.0
        %290 = vmatpush1.msra.mxu0 %v175
        %291 = vmatprep.subr.mxu0 0.0
        %292 = vmatpush1.msra.mxu0 %v176
        %293 = vmatprep.subr.mxu0 0.0
        %294 = vmatpush1.msra.mxu0 %v177
        %295 = vmatprep.subr.mxu0 0.0
        %296 = vmatpush1.msra.mxu0 %v178
        %297 = vmatprep.subr.mxu0 0.0
        %298 = vmatpush1.msra.mxu0 0.0
        %299 = vmatprep.subr.mxu0 0.0
        %300 = vmatpush1.msra.mxu0 0.0
        %301 = vmatprep.subr.mxu0 0.0
        %302 = vmatpush1.msra.mxu0 0.0
        %303 = vmatprep.subr.mxu0 0.0
        %304 = vmatpush1.msra.mxu0 0.0
        %305 = vmatprep.subr.mxu0 0.0
        %306 = vmatpush1.msra.mxu0 0.0
        %307 = vmatprep.subr.mxu0 0.0
        %308 = vmatpush1.msra.mxu0 0.0
        %309 = vmatprep.subr.mxu0 0.0
        %310 = vmatpush1.msra.mxu0 0.0
        %311 = vmatprep.subr.mxu0 0.0
        %312 = vmatpush1.msra.mxu0 0.0
        %313 = vmatprep.subr.mxu0 0.0
        %314 = vmatpush1.msra.mxu0 0.0
        %315 = vmatprep.subr.mxu0 0.0
        %316 = vmatpush1.msra.mxu0 0.0
        %317 = vmatprep.subr.mxu0 0.0
        %318 = vmatpush1.msra.mxu0 0.0
        %319 = vmatprep.subr.mxu0 0.0
        %320 = vmatpush1.msra.mxu0 0.0
        %321 = vmatprep.subr.mxu0 0.0
        %322 = vmatpush1.msra.mxu0 0.0
        %323 = vmatprep.subr.mxu0 0.0
        %324 = vmatpush1.msra.mxu0 0.0
        %325 = vmatprep.subr.mxu0 0.0
        %326 = vmatpush1.msra.mxu0 0.0
        %327 = vmatprep.subr.mxu0 0.0
        %328 = vmatpush1.msra.mxu0 0.0
        %329 = vmatprep.subr.mxu0 0.0
        %330 = vmatpush1.msra.mxu0 0.0
        %331 = vmatprep.subr.mxu0 0.0
        %332 = vmatpush1.msra.mxu0 0.0
        %333 = vmatprep.subr.mxu0 0.0
        %334 = vmatpush1.msra.mxu0 0.0
        %335 = vmatprep.subr.mxu0 0.0
        %336 = vmatpush1.msra.mxu0 0.0
        %337 = vmatprep.subr.mxu0 0.0
        %338 = vmatpush1.msra.mxu0 0.0
        %339 = vmatprep.subr.mxu0 0.0
        %340 = vmatpush1.msra.mxu0 0.0
        %341 = vmatprep.subr.mxu0 0.0
        %342 = vmatpush1.msra.mxu0 0.0
        %343 = vmatprep.subr.mxu0 0.0
        %344 = vmatpush1.msra.mxu0 0.0
        %345 = vmatprep.subr.mxu0 0.0
        %346 = vmatpush1.msra.mxu0 0.0
        %347 = vmatprep.subr.mxu0 0.0
        %348 = vmatpush1.msra.mxu0 0.0
        %349 = vmatprep.subr.mxu0 0.0
        %350 = vmatpush1.msra.mxu0 0.0
        %351 = vmatprep.subr.mxu0 0.0
        %352 = vmatpush1.msra.mxu0 0.0
        %353 = vmatprep.mubr.f32.mxu0 0.0
        %354 = vmatmul.mubr.f32.gmra.mrb[0].mxu0 %v287
        %v355 = vpop.f32.mrb[0].mxu0
        %v356 = vadd.f32 0.0, %v355
        %v357 = vpop.f32.mrb[0].mxu0
        %358 = vdwg.mxu0
        %v359 = vtanh.pop %v356
        %v360 = vlaneseq
        %v361 = vshrl.u32 %v360, 7
        %v362 = vsub.s32 0, %v361
        %v363 = vrot.slane %v359, %v362
        %v364 = vmul.f32 %v277, %v363
        %v365 = vsel %vm179, %v364, 0.0
        %366 = vadd.xlane.f32.xlu0 %v365
        %v367 = vpop.xlane.xlu0 %366
        %v368 = vxor.u32 %v367, 2147483648
        %v369 = vmul.f32 %v368, 1.442695
        %v370 = vpow.pop %v369
        %v371 = vadd.f32 %v370, 1.0
        %v372 = vrcp.pop %v371
        %v373 = vmul.f32 1.0, %v372
        %v374 = vmul.f32 %v277, %v373
        %v375 = vsel %vm179, %v374, 0.0
        %v376 = vrot.slane %v375, 4
        %v377 = vadd.f32 %v375, %v376
        %v378 = vrot.slane %v377, 2
        %v379 = vadd.f32 %v377, %v378
        %v380 = vrot.slane %v379, 1
        %v381 = vadd.f32 %v379, %v380
        %vm382 = vcmask 254976
        %383 = vst.msk [vmem:[%s173] sm:$0x3] %vm382, %v381
        %s384 = sand.u32 %s75, 1
        %s385 = scalar_lea.sflag [#allocation4], %s384
        %s386 = sand.u32 %s75, 1
        %s387 = smul.addr %s386, 2
        %s388 = scalar_lea.vmem [#allocation7], %s387
        // Predicated region
        $region37: #{tpu_custom_call.1} parent=27 // pred_check
          %p389 = pneg %p85
        $region38: #{tpu_custom_call.1} parent=27 // pred_check_branch
          %391 = sbr.rel (%p389) target = $region40
        $region39: #{tpu_custom_call.1} parent=27 // pred_region
          %s393 = ssub.s32 32, 32
          %394 = vsyncadd %s385, %s393
          %s395 = smul.addr %s20, 32
          %s396 = scalar_lea.hbm %s2, %s395
          %s398 = sshll.u32 %s388, 4
          %s399 = int_to_ptr.vmem [resolvable:$true] %s398
          %401 = dma.vmem_to_hbm [thread:$0]  %s399, 32, %s396, %s385
        $region40: #{tpu_custom_call.1} parent=27 // pred_fallthru
          _
      $region28: #{tpu_custom_call.1} parent=5 // pred_fallthru
        _
      %p402 = scmp.le.s32.totalorder 2, %s15
      // Predicated region
      $region41: #{tpu_custom_call.1} parent=5 // pred_check
        %p403 = pneg %p402
      $region42: #{tpu_custom_call.1} parent=5 // pred_check_branch
        %405 = sbr.rel (%p403) target = $region44
      $region43: #{tpu_custom_call.1} parent=5 // pred_region
        %s406 = ssub.s32 %s15, 2
        // Predicated region
        $region45: #{tpu_custom_call.1} parent=43 // pred_check
          %p407 = pneg %p91
        $region46: #{tpu_custom_call.1} parent=43 // pred_check_branch
          %409 = sbr.rel (%p407) target = $region48
        $region47: #{tpu_custom_call.1} parent=43 // pred_region
          %s410 = sand.u32 %s76, 1
          %s411 = scalar_lea.sflag [#allocation4], %s410
          %s412 = sand.u32 %s76, 1
          %s413 = smul.addr %s412, 2
          %s414 = scalar_lea.vmem [#allocation7], %s413
          %415 = dma.done %s411, 32
        $region48: #{tpu_custom_call.1} parent=43 // pred_fallthru
          _
      $region44: #{tpu_custom_call.1} parent=5 // pred_fallthru
        _
    $region6: #{tpu_custom_call.1} parent=1 // loop_footer
      %s19 = sadd.s32 1, %s15
    $region7: #{tpu_custom_call.1} parent=1 // loop_footer_branch
      %14 = sbr.rel target = $region3
    $region8: #{tpu_custom_call.1} parent=1 // loop_exit
      _
    %416 = vsyncpa [#allocation3], 1
    %s417 = scalar_lea.sflag [#allocation3], 1
    %418 = vsyncpa %s417, 1
    %419 = vsyncpa [#allocation6], 1
    %420 = vsyncpa [#allocation4], 1
    %s421 = scalar_lea.sflag [#allocation4], 1
    %422 = vsyncpa %s421, 1

</llo_original>
